<compile_context>
chip_gen: v7x
topology: tpu7x:2x2x1
jax: 0.10.0
libtpu: 0.0.40
codegen_flags: <defaults>
</compile_context>

<pallas_src>
import functools

import jax
import jax.numpy as jnp
from jax import lax
from jax.experimental import pallas as pl
from jax.experimental.pallas import tpu as pltpu

_MIB = 1024 * 1024

# Lane-dim (last-axis) tiles must stay multiples of 128 (or fall back to the
# full dim); sublane-dim tiles only need multiples of 8.
_LANE_TILES = (512, 256, 128)
_SUBLANE_TILES = (512, 256, 128, 64, 32, 16, 8)


def _pick_tile(dim, candidates):
    """Largest candidate that evenly divides `dim`, else the full dim."""
    for c in candidates:
        if c <= dim and dim % c == 0:
            return c
    return dim


def _vmem_limit(needed_bytes):
    """Scoped-VMEM budget: actual pipeline footprint + headroom (bounded)."""
    return int(min(127 * _MIB, max(32 * _MIB, int(needed_bytes) + 8 * _MIB)))


# ---------------------------------------------------------------------------
# Linear (no bias):  out = x @ W^T     x: (M, K), W: (N, K) -> (M, N)
# ---------------------------------------------------------------------------
def _linear_kernel(x_ref, w_ref, o_ref, acc_ref):
    k = pl.program_id(2)

    @pl.when(k == 0)
    def _():
        acc_ref[...] = jnp.zeros_like(acc_ref)

    # (tm, tk) contracted with (tn, tk) over tk -> (tm, tn)   [x @ W^T]
    acc_ref[...] += lax.dot_general(
        x_ref[...], w_ref[...],
        dimension_numbers=(((1,), (1,)), ((), ())),
        preferred_element_type=jnp.float32)

    @pl.when(k == pl.num_programs(2) - 1)
    def _():
        o_ref[...] = acc_ref[...].astype(o_ref.dtype)


def linear_nobias(x, w):
    """x: (M, K), w: (N, K) in PyTorch Linear layout. Returns x @ w.T."""
    M, K = x.shape
    N, K2 = w.shape
    assert K == K2, (x.shape, w.shape)

    tm = _pick_tile(M, _SUBLANE_TILES)
    tn = _pick_tile(N, _LANE_TILES)
    tk = _pick_tile(K, _LANE_TILES)

    esz = jnp.dtype(x.dtype).itemsize
    needed = 2 * (tm * tk + tn * tk + tm * tn) * esz + tm * tn * 4

    return pl.pallas_call(
        _linear_kernel,
        out_shape=jax.ShapeDtypeStruct((M, N), x.dtype),
        grid_spec=pltpu.PrefetchScalarGridSpec(
            num_scalar_prefetch=0,
            grid=(M // tm, N // tn, K // tk),
            in_specs=[
                pl.BlockSpec((tm, tk), lambda i, j, k: (i, k)),
                pl.BlockSpec((tn, tk), lambda i, j, k: (j, k)),
            ],
            out_specs=pl.BlockSpec((tm, tn), lambda i, j, k: (i, j)),
            scratch_shapes=[pltpu.VMEM((tm, tn), jnp.float32)],
        ),
        compiler_params=pltpu.CompilerParams(
            dimension_semantics=("parallel", "parallel", "arbitrary"),
            vmem_limit_bytes=_vmem_limit(needed)),
    )(x, w)


# ---------------------------------------------------------------------------
# Attention weights:  att = softmax(Q @ K^T, axis=-1)   (Q already scaled)
# Grid over query-row blocks, fully parallel; full K resident; no scratch.
# ---------------------------------------------------------------------------
def _softmax_att_kernel(q_ref, k_ref, att_ref, *, ignore_itself, apperture):
    q = q_ref[...]                       # (bq, d)
    k = k_ref[...]                       # (n, d)  -- full K, resident
    # logits block: (bq, n) = Q @ K^T (rhs-transposed MXU form, no transpose op)
    logits = lax.dot_general(
        q, k, dimension_numbers=(((1,), (1,)), ((), ())),
        preferred_element_type=jnp.float32)

    if ignore_itself or apperture > 0:
        j = pl.program_id(0)
        bq, n = logits.shape
        # Single delta = col - row; both masks derived from it (cheap VPU path).
        rows = j * bq + lax.broadcasted_iota(jnp.int32, (bq, 1), 0)
        cols = lax.broadcasted_iota(jnp.int32, (1, n), 1)
        delta = cols - rows
        neg_inf = jnp.float32(-jnp.inf)
        if ignore_itself:
            logits = jnp.where(delta == 0, neg_inf, logits)
        if apperture > 0:
            logits = jnp.where(jnp.abs(delta) >= apperture, neg_inf, logits)
        # NOTE: a fully masked row produces NaN, exactly like PyTorch's softmax.

    # Numerically stable row softmax; exp + approx reciprocal use the EUP slot,
    # one Newton step (2 VPU ops on a (bq, 1) vector) restores f32 accuracy.
    m = jnp.max(logits, axis=-1, keepdims=True)
    p = jnp.exp(logits - m)
    denom = jnp.sum(p, axis=-1, keepdims=True)
    r = pl.reciprocal(denom, approx=True)
    r = r * (2.0 - denom * r)
    att_ref[...] = (p * r).astype(att_ref.dtype)

    # TODO(synk): training-mode nn.Dropout(0.5) on the attention weights is
    # omitted (eval-mode forward); add pltpu.prng_seed/prng_random_bits masking
    # if a training-equivalent forward is needed.


def attention_weights(q_arr, k_arr, *, n, d, q_col_block, k_col_block,
                      apperture, ignore_itself, out_dtype):
    bq = _pick_tile(n, _SUBLANE_TILES)
    esz = jnp.dtype(q_arr.dtype).itemsize
    osz = jnp.dtype(out_dtype).itemsize
    needed = 2 * bq * d * esz + 2 * n * d * esz + 2 * bq * n * osz

    kernel = functools.partial(
        _softmax_att_kernel,
        ignore_itself=bool(ignore_itself),
        apperture=int(apperture) if apperture is not None else -1)

    # TODO(synk): for very long sequences (n*d*4 approaching VMEM) switch to a
    # K-column-blocked online softmax so no buffer scales with full n; when
    # apperture > 0, restrict K blocks to the band instead of masking.
    return pl.pallas_call(
        kernel,
        out_shape=jax.ShapeDtypeStruct((n, n), out_dtype),
        grid_spec=pltpu.PrefetchScalarGridSpec(
            num_scalar_prefetch=0,
            grid=(n // bq,),
            in_specs=[
                pl.BlockSpec((bq, d), lambda i: (i, q_col_block)),  # Q rows
                pl.BlockSpec((n, d), lambda i: (0, k_col_block)),   # full K
            ],
            out_specs=pl.BlockSpec((bq, n), lambda i: (i, 0)),
        ),
        compiler_params=pltpu.CompilerParams(
            dimension_semantics=("parallel",),
            vmem_limit_bytes=_vmem_limit(needed)),
    )(q_arr, k_arr)


# ---------------------------------------------------------------------------
# y = a^T @ b[:, col_start:col_start+col_size]   (a: (Kc, M), b: (Kc, Nb))
# Standard megacore-parallel tiled matmul; contraction over dim 0 of both so
# no host-side transposes and only a small (ti, tn) accumulator tile.
# ---------------------------------------------------------------------------
def _atb_kernel(a_ref, b_ref, o_ref, acc_ref):
    k = pl.program_id(2)

    @pl.when(k == 0)
    def _():
        acc_ref[...] = jnp.zeros_like(acc_ref)

    acc_ref[...] += lax.dot_general(
        a_ref[...], b_ref[...],
        dimension_numbers=(((0,), (0,)), ((), ())),
        preferred_element_type=jnp.float32)

    @pl.when(k == pl.num_programs(2) - 1)
    def _():
        o_ref[...] = acc_ref[...].astype(o_ref.dtype)


def matmul_at_b(a, b, *, b_col_start=0, b_col_size=None, out_dtype=None):
    Kc, M = a.shape
    Kc2, Nb = b.shape
    assert Kc == Kc2, (a.shape, b.shape)
    if b_col_size is None:
        b_col_size = Nb - b_col_start
    N = b_col_size
    out_dtype = out_dtype if out_dtype is not None else a.dtype

    ti = _pick_tile(M, _LANE_TILES)       # lane dim of `a` block / sublane of out
    tn = _pick_tile(N, _LANE_TILES)       # lane dim of `b` and out blocks
    tk = _pick_tile(Kc, _SUBLANE_TILES)   # contraction (sublane) dim
    assert b_col_start % tn == 0, (b_col_start, tn)
    col0 = b_col_start // tn

    esz = jnp.dtype(a.dtype).itemsize
    needed = (2 * (tk * ti + tk * tn) * esz
              + 2 * ti * tn * jnp.dtype(out_dtype).itemsize + ti * tn * 4)

    return pl.pallas_call(
        _atb_kernel,
        out_shape=jax.ShapeDtypeStruct((M, N), out_dtype),
        grid_spec=pltpu.PrefetchScalarGridSpec(
            num_scalar_prefetch=0,
            grid=(M // ti, N // tn, Kc // tk),
            in_specs=[
                pl.BlockSpec((tk, ti), lambda i, j, k: (k, i)),
                pl.BlockSpec((tk, tn), lambda i, j, k: (k, col0 + j)),
            ],
            out_specs=pl.BlockSpec((ti, tn), lambda i, j, k: (i, j)),
            scratch_shapes=[pltpu.VMEM((ti, tn), jnp.float32)],
        ),
        compiler_params=pltpu.CompilerParams(
            dimension_semantics=("parallel", "parallel", "arbitrary"),
            vmem_limit_bytes=_vmem_limit(needed)),
    )(a, b)


# ---------------------------------------------------------------------------
# Full SelfAttention forward.
# ---------------------------------------------------------------------------
def self_attention_forward(x, wk, wq, wv, wo, *, apperture=-1,
                           ignore_itself=False):
    """x: (n, m); wk/wq/wv: (d, m); wo: (m, d). Returns (y, att_weights)."""
    n, m = x.shape
    d = wk.shape[0]

    # Fused QKV projection: stack [Wk; 0.06*Wq; Wv] so x is streamed once;
    # the PyTorch `Q *= 0.06` is folded into the Q weight slice.
    w_qkv = jnp.concatenate(
        [wk, wq * jnp.asarray(0.06, wq.dtype), wv], axis=0)        # (3d, m)
    qkv = linear_nobias(x, w_qkv)                                  # (n, 3d)

    if d % 128 == 0:
        # Read K / Q / V straight out of the packed buffer via BlockSpec
        # column-block offsets (no host-side slicing copies).
        k_arr = q_arr = v_arr = qkv
        k_blk, q_blk, v_col_start = 0, 1, 2 * d
    else:
        k_arr, q_arr, v_arr = jnp.split(qkv, 3, axis=1)
        k_blk = q_blk = 0
        v_col_start = 0

    att = attention_weights(
        q_arr, k_arr, n=n, d=d, q_col_block=q_blk, k_col_block=k_blk,
        apperture=apperture, ignore_itself=ignore_itself, out_dtype=x.dtype)

    # y = att^T @ V  (megacore-parallel tiled matmul, no resident accumulator).
    y = matmul_at_b(att, v_arr, b_col_start=v_col_start, b_col_size=d,
                    out_dtype=x.dtype)

    y = linear_nobias(y, wo)                                       # output_linear
    return y, att


if __name__ == "__main__":
    key = jax.random.PRNGKey(0)
    kx, kk, kq, kv, ko = jax.random.split(key, 5)

    # Small shapes consistent with the module's 2-D input (seq, features);
    # feature dims kept lane-dense (multiples of 128).
    n, m, d = 16, 128, 128

    x = jax.random.normal(kx, (n, m), dtype=jnp.float32)

    bm = 1.0 / (m ** 0.5)
    bd = 1.0 / (d ** 0.5)
    wk = jax.random.uniform(kk, (d, m), jnp.float32, minval=-bm, maxval=bm)
    wq = jax.random.uniform(kq, (d, m), jnp.float32, minval=-bm, maxval=bm)
    wv = jax.random.uniform(kv, (d, m), jnp.float32, minval=-bm, maxval=bm)
    wo = jax.random.uniform(ko, (m, d), jnp.float32, minval=-bd, maxval=bd)

    def reference(x, apperture=-1, ignore_itself=False):
        K = x @ wk.T
        Q = (x @ wq.T) * 0.06
        V = x @ wv.T
        logits = Q @ K.T
        if ignore_itself:
            logits = jnp.where(jnp.eye(n, dtype=bool), -jnp.inf, logits)
        if apperture > 0:
            r = jnp.arange(n)
            band = jnp.abs(r[:, None] - r[None, :]) >= apperture
            logits = jnp.where(band, -jnp.inf, logits)
        att = jax.nn.softmax(logits, axis=-1)
        y = jnp.matmul(V.T, att).T          # == att.T @ V
        return y @ wo.T, att

    # Default config (apperture=-1, ignore_itself=False), as in the module.
    y, att = self_attention_forward(x, wk, wq, wv, wo)
    y = jax.block_until_ready(y)
    att = jax.block_until_ready(att)
    y_ref, att_ref = reference(x)
    assert jnp.allclose(att, att_ref, atol=1e-4, rtol=1e-4), "att mismatch"
    assert jnp.allclose(y, y_ref, atol=1e-4, rtol=1e-4), "y mismatch"

    # Masked config exercising the ignore_itself / apperture code path.
    y2, att2 = self_attention_forward(x, wk, wq, wv, wo,
                                      apperture=4, ignore_itself=True)
    y2 = jax.block_until_ready(y2)
    att2 = jax.block_until_ready(att2)
    y2_ref, att2_ref = reference(x, apperture=4, ignore_itself=True)
    assert jnp.allclose(att2, att2_ref, atol=1e-4, rtol=1e-4), "masked att mismatch"
    assert jnp.allclose(y2, y2_ref, atol=1e-4, rtol=1e-4), "masked y mismatch"

    print("KERNEL_OK")
</pallas_src>

<mosaic_0001>
module attributes {stable_mosaic.version = 11 : i64} {
  func.func @_linear_kernel(%arg0: i32, %arg1: i32, %arg2: i32, %arg3: memref<16x128xf32, #tpu.memory_space<vmem>>, %arg4: memref<128x128xf32, #tpu.memory_space<vmem>>, %arg5: memref<16x128xf32, #tpu.memory_space<vmem>>, %arg6: memref<16x128xf32, #tpu.memory_space<vmem>>) attributes {dimension_semantics = [#tpu.dimension_semantics<parallel>, #tpu.dimension_semantics<parallel>, #tpu.dimension_semantics<arbitrary>], iteration_bounds = array<i64: 1, 3, 1>, scalar_prefetch = 0 : i64, scratch_operands = 1 : i64, tpu.core_type = #tpu.core_type<tc>, window_params = [{transform_indices = @transform_0, window_bounds = array<i64: 16, 128>}, {transform_indices = @transform_1, window_bounds = array<i64: 128, 128>}, {transform_indices = @transform_2, window_bounds = array<i64: 16, 128>}]} {
    %c0_i32 = arith.constant 0 : i32
    %0 = arith.cmpi eq, %arg2, %c0_i32 : i32
    %1 = arith.extui %0 : i1 to i32
    %c0_i32_0 = arith.constant 0 : i32
    %2 = arith.cmpi ne, %1, %c0_i32_0 : i32
    scf.if %2 {
      %cst_10 = arith.constant 0.000000e+00 : f32
      %12 = vector.broadcast %cst_10 : f32 to vector<16x128xf32>
      %c0_11 = arith.constant 0 : index
      %c0_12 = arith.constant 0 : index
      %13 = vector.load %arg6[%c0_11, %c0_12] : memref<16x128xf32, #tpu.memory_space<vmem>>, vector<16x128xf32>
      tpu.vector_store %arg6[%c0_11, %c0_12], %12 {strides = array<i32>} : memref<16x128xf32, #tpu.memory_space<vmem>>, vector<16x128xf32>,
    } else {
    }
    %c0 = arith.constant 0 : index
    %c0_1 = arith.constant 0 : index
    %3 = vector.load %arg6[%c0, %c0_1] : memref<16x128xf32, #tpu.memory_space<vmem>>, vector<16x128xf32>
    %c0_2 = arith.constant 0 : index
    %c0_3 = arith.constant 0 : index
    %4 = vector.load %arg3[%c0_2, %c0_3] : memref<16x128xf32, #tpu.memory_space<vmem>>, vector<16x128xf32>
    %c0_4 = arith.constant 0 : index
    %c0_5 = arith.constant 0 : index
    %5 = vector.load %arg4[%c0_4, %c0_5] : memref<128x128xf32, #tpu.memory_space<vmem>>, vector<128x128xf32>
    %cst = arith.constant dense<0.000000e+00> : vector<16x128xf32>
    %6 = tpu.matmul %4, %5, %cst {dimension_numbers = #tpu.dot_dimension_numbers<[1], [1], [0], [0], [0, 0, 1, 0], [], []>} : vector<16x128xf32>, vector<128x128xf32>, vector<16x128xf32> -> vector<16x128xf32>
    %7 = arith.addf %3, %6 : vector<16x128xf32>
    %c0_6 = arith.constant 0 : index
    %c0_7 = arith.constant 0 : index
    %8 = vector.load %arg6[%c0_6, %c0_7] : memref<16x128xf32, #tpu.memory_space<vmem>>, vector<16x128xf32>
    tpu.vector_store %arg6[%c0_6, %c0_7], %7 {strides = array<i32>} : memref<16x128xf32, #tpu.memory_space<vmem>>, vector<16x128xf32>,
    %c0_i32_8 = arith.constant 0 : i32
    %9 = arith.cmpi eq, %arg2, %c0_i32_8 : i32
    %10 = arith.extui %9 : i1 to i32
    %c0_i32_9 = arith.constant 0 : i32
    %11 = arith.cmpi ne, %10, %c0_i32_9 : i32
    scf.if %11 {
      %c0_10 = arith.constant 0 : index
      %c0_11 = arith.constant 0 : index
      %12 = vector.load %arg6[%c0_10, %c0_11] : memref<16x128xf32, #tpu.memory_space<vmem>>, vector<16x128xf32>
      %c0_12 = arith.constant 0 : index
      %c0_13 = arith.constant 0 : index
      %13 = vector.load %arg5[%c0_12, %c0_13] : memref<16x128xf32, #tpu.memory_space<vmem>>, vector<16x128xf32>
      tpu.vector_store %arg5[%c0_12, %c0_13], %12 {strides = array<i32>} : memref<16x128xf32, #tpu.memory_space<vmem>>, vector<16x128xf32>,
    } else {
    }
    return
  }
  func.func @transform_0(%arg0: i32, %arg1: i32, %arg2: i32) -> (i32, i32) {
    %c0_i32 = arith.constant 0 : i32
    return %arg0, %arg2 : i32, i32
  }
  func.func @transform_1(%arg0: i32, %arg1: i32, %arg2: i32) -> (i32, i32) {
    %c0_i32 = arith.constant 0 : i32
    return %arg1, %arg2 : i32, i32
  }
  func.func @transform_2(%arg0: i32, %arg1: i32, %arg2: i32) -> (i32, i32) {
    %c0_i32 = arith.constant 0 : i32
    return %arg0, %arg1 : i32, i32
  }
}

</mosaic_0001>

<llo_original>
// kernel: tpu_custom_call.1
$region0: #{tpu_custom_call.1}
  #allocation0 [shape = 'u32[]', space=smem, size = 0x4, offset = 0x4, fixed_abs, tag = 'smem constant byte address 0x4 - core index']
  #allocation1 [shape = 'u32[144,128]{1,0:T(1,128)}', space=vmem, size = 0x12000, scoped, tag = 'internal scratch']
  #allocation2 [shape = 'f32[16,128]{1,0:T(8,128)}', space=vmem, size = 0x2000, scoped, tag = 'scratch operand']
  %s0 = inlined_call_operand.hbm [shape: f32[16,128], index: 0, kind: input, shape index: {}]
  %s1 = inlined_call_operand.hbm [shape: f32[384,128], index: 1, kind: input, shape index: {}]
  %s2 = inlined_call_operand.hbm [shape: f32[16,384], index: 2, kind: output, shape index: {}]
  %s3 = sld [smem:[#allocation0]]
  $region57: #{tpu_custom_call.1} parent=0
    _
  %s5 = ssub.s32 1, %s3
  %s6 = scalar_select 0, %s5, %s3
  $region1: #{tpu_custom_call.1} parent=0
    #allocation3 [shape = 'u8[8192]{0}', space=vmem, size = 0x2000, scoped, tag = 'input window, operand 0, single buffered']
    #allocation4 [shape = 's32[2]{0}', space=sflag, size = 0x8, scoped, tag = 'scoped memory for tpu_custom_call.1']
    #allocation5 [shape = 's32[2]{0}', space=sflag, size = 0x8, scoped, tag = 'scoped memory for tpu_custom_call.1']
    #allocation6 [shape = 'u8[131072]{0}', space=vmem, size = 0x20000, scoped, tag = 'input window, operand 1']
    #allocation7 [shape = 's32[2]{0}', space=sflag, size = 0x8, scoped, tag = 'scoped memory for tpu_custom_call.1']
    #allocation8 [shape = 'u8[16384]{0}', space=vmem, size = 0x4000, scoped, tag = 'output window, operand 0']
    %7 = vsyncpa [#allocation4], 0
    %8 = vsyncpa [#allocation7], 0
    %s9 = scalar_lea.sflag [#allocation7], 1
    %10 = vsyncpa %s9, 0
    %11 = vsyncpa [#allocation5], 0
    %s12 = scalar_lea.sflag [#allocation5], 1
    %13 = vsyncpa %s12, 0
    loop: start=0, step=1, limit=5
    $region2: #{tpu_custom_call.1} parent=1 // loop_pre_header
      _
    $region3: #{tpu_custom_call.1} parent=1 // loop_header
      %s15 = sphi 0, %s19
      %p16 = scmp.ge.s32.totalorder %s15, 5
      %s22 = sphi 0, %s41
      %s23 = sphi 0, %s37
      %s24 = sphi 0, %s33
      %s25 = sphi 0, %s22
      %s26 = sphi 0, %s23
      %s27 = sphi 0, %s24
      %s28 = sphi 0, %s25
      %s29 = sphi 0, %s26
      %s30 = sphi 0, %s27
      %s46 = sphi 0, %s48
      %s49 = sphi 0, %s46
      %s50 = sphi 0, %s49
      %s66 = sphi 0, %s50
      %s74 = sphi 0, %s76
      %s77 = sphi 0, %s74
      %s78 = sphi 0, %s77
      %s94 = sphi 0, %s78
      %s102 = sphi 0, %s104
      %s105 = sphi 0, %s102
      %s106 = sphi 0, %s105
      %s122 = sphi 0, %s106
    $region4: #{tpu_custom_call.1} parent=1 // loop_header_branch
      %18 = sbr.rel (%p16) target = $region8
    $region5: #{tpu_custom_call.1} parent=1 // loop_body
      %s20 = ssub.s32 %s15, 1
      %s21 = ssub.s32 %s15, 2
      %s31 = sadd.s32 1, %s24
      %p32 = scmp.ge.s32.totalorder %s31, 1
      %s33 = scalar_select %p32, 0, %s31
      %s34 = sadd.s32 1, %s23
      %s35 = scalar_select %p32, %s34, %s23
      %p36 = scmp.ge.s32.totalorder %s35, 3
      %s37 = scalar_select %p36, 0, %s35
      %s38 = sadd.s32 1, %s22
      %s39 = scalar_select %p36, %s38, %s22
      %p40 = scmp.ge.s32.totalorder %s39, 1
      %s41 = scalar_select %p40, 0, %s39
      %s42 = ssub.s32 %s22, %s41
      %s43 = ssub.s32 %s24, %s33
      %s44 = sor.u32 %s42, %s43
      %p45 = scmp.eq.s32.totalorder %s44, 0
      %s47 = sadd.s32 %s46, 1
      %s48 = scalar_select %p45, %s46, %s47
      %p51 = pneg %p45
      %p52 = scmp.eq.s32.totalorder %s15, 2
      %p53 = por %p51, %p52
      %p54 = scmp.ne.s32.totalorder %s46, %s49
      %p55 = scmp.eq.s32.totalorder %s15, 0
      %p56 = por %p54, %p55
      %p57 = scmp.ne.s32.totalorder %s46, %s49
      %p58 = scmp.eq.s32.totalorder %s20, 2
      %p59 = por %p57, %p58
      %p60 = scmp.ne.s32.totalorder %s49, %s50
      %p61 = scmp.eq.s32.totalorder %s20, 0
      %p62 = por %p60, %p61
      %p63 = scmp.ne.s32.totalorder %s49, %s50
      %p64 = scmp.eq.s32.totalorder %s21, 2
      %p65 = por %p63, %p64
      %p67 = scmp.ne.s32.totalorder %s50, %s66
      %p68 = scmp.eq.s32.totalorder %s21, 0
      %p69 = por %p67, %p68
      %s70 = ssub.s32 %s23, %s37
      %s71 = ssub.s32 %s24, %s33
      %s72 = sor.u32 %s70, %s71
      %p73 = scmp.eq.s32.totalorder %s72, 0
      %s75 = sadd.s32 %s74, 1
      %s76 = scalar_select %p73, %s74, %s75
      %p79 = pneg %p73
      %p80 = scmp.eq.s32.totalorder %s15, 2
      %p81 = por %p79, %p80
      %p82 = scmp.ne.s32.totalorder %s74, %s77
      %p83 = scmp.eq.s32.totalorder %s15, 0
      %p84 = por %p82, %p83
      %p85 = scmp.ne.s32.totalorder %s74, %s77
      %p86 = scmp.eq.s32.totalorder %s20, 2
      %p87 = por %p85, %p86
      %p88 = scmp.ne.s32.totalorder %s77, %s78
      %p89 = scmp.eq.s32.totalorder %s20, 0
      %p90 = por %p88, %p89
      %p91 = scmp.ne.s32.totalorder %s77, %s78
      %p92 = scmp.eq.s32.totalorder %s21, 2
      %p93 = por %p91, %p92
      %p95 = scmp.ne.s32.totalorder %s78, %s94
      %p96 = scmp.eq.s32.totalorder %s21, 0
      %p97 = por %p95, %p96
      %s98 = ssub.s32 %s22, %s41
      %s99 = ssub.s32 %s23, %s37
      %s100 = sor.u32 %s98, %s99
      %p101 = scmp.eq.s32.totalorder %s100, 0
      %s103 = sadd.s32 %s102, 1
      %s104 = scalar_select %p101, %s102, %s103
      %p107 = pneg %p101
      %p108 = scmp.eq.s32.totalorder %s15, 2
      %p109 = por %p107, %p108
      %p110 = scmp.ne.s32.totalorder %s102, %s105
      %p111 = scmp.eq.s32.totalorder %s15, 0
      %p112 = por %p110, %p111
      %p113 = scmp.ne.s32.totalorder %s102, %s105
      %p114 = scmp.eq.s32.totalorder %s20, 2
      %p115 = por %p113, %p114
      %p116 = scmp.ne.s32.totalorder %s105, %s106
      %p117 = scmp.eq.s32.totalorder %s20, 0
      %p118 = por %p116, %p117
      %p119 = scmp.ne.s32.totalorder %s105, %s106
      %p120 = scmp.eq.s32.totalorder %s21, 2
      %p121 = por %p119, %p120
      %p123 = scmp.ne.s32.totalorder %s106, %s122
      %p124 = scmp.eq.s32.totalorder %s21, 0
      %p125 = por %p123, %p124
      %p126 = scmp.le.s32.totalorder 1, %s15
      %p127 = scmp.lt.s32.totalorder %s15, 4
      %p128 = pnand %p126, %p127
      %p129 = pneg %p128
      // Predicated region
      $region9: #{tpu_custom_call.1} parent=5 // pred_check
        _
      $region10: #{tpu_custom_call.1} parent=5 // pred_check_branch
        %131 = sbr.rel (%p128) target = $region12
      $region11: #{tpu_custom_call.1} parent=5 // pred_region
        %s132 = ssub.s32 %s15, 1
        // Predicated region
        $region13: #{tpu_custom_call.1} parent=11 // pred_check
          %p133 = pneg %p62
        $region14: #{tpu_custom_call.1} parent=11 // pred_check_branch
          %135 = sbr.rel (%p133) target = $region16
        $region15: #{tpu_custom_call.1} parent=11 // pred_region
          %s136 = smul.u32 2, %s25
          %s138 = ssub.s32 256, 256
          %139 = vsyncadd [#allocation4], %s138
          %s140 = sadd.s32 %s27, %s136
          %s141 = smul.addr %s140, 128
          %s142 = scalar_lea.hbm %s0, %s141
          %s143 = sshll.u32 [#allocation3], 4
          %s144 = int_to_ptr.vmem [resolvable:$true] %s143
          %149 = dma.hbm_to_vmem [thread:$0]  %s142, 256, %s144, [#allocation4], 128, 128, 8
        $region16: #{tpu_custom_call.1} parent=11 // pred_fallthru
          _
      $region12: #{tpu_custom_call.1} parent=5 // pred_fallthru
        _
      %p150 = scmp.lt.s32.totalorder %s15, 3
      // Predicated region
      $region17: #{tpu_custom_call.1} parent=5 // pred_check
        %p151 = pneg %p150
      $region18: #{tpu_custom_call.1} parent=5 // pred_check_branch
        %153 = sbr.rel (%p151) target = $region20
      $region19: #{tpu_custom_call.1} parent=5 // pred_region
        // Predicated region
        $region21: #{tpu_custom_call.1} parent=19 // pred_check
          %p154 = pneg %p84
        $region22: #{tpu_custom_call.1} parent=19 // pred_check_branch
          %156 = sbr.rel (%p154) target = $region24
        $region23: #{tpu_custom_call.1} parent=19 // pred_region
          %s157 = sand.u32 %s74, 1
          %s158 = scalar_lea.sflag [#allocation7], %s157
          %s159 = sand.u32 %s74, 1
          %s160 = smul.addr %s159, 128
          %s161 = scalar_lea.vmem [#allocation6], %s160
          %s162 = smul.u32 16, %s23
          %s164 = ssub.s32 2048, 2048
          %165 = vsyncadd %s158, %s164
          %s166 = sadd.s32 %s24, %s162
          %s167 = smul.addr %s166, 128
          %s168 = scalar_lea.hbm %s1, %s167
          %s169 = sshll.u32 %s161, 4
          %s170 = int_to_ptr.vmem [resolvable:$true] %s169
          %175 = dma.hbm_to_vmem [thread:$0]  %s168, 2048, %s170, %s158, 128, 128, 8
        $region24: #{tpu_custom_call.1} parent=19 // pred_fallthru
          _
      $region20: #{tpu_custom_call.1} parent=5 // pred_fallthru
        _
      %p176 = scmp.le.s32.totalorder 1, %s15
      %p177 = scmp.lt.s32.totalorder %s15, 4
      %p178 = pnand %p176, %p177
      %p179 = pneg %p178
      // Predicated region
      $region25: #{tpu_custom_call.1} parent=5 // pred_check
        _
      $region26: #{tpu_custom_call.1} parent=5 // pred_check_branch
        %181 = sbr.rel (%p178) target = $region28
      $region27: #{tpu_custom_call.1} parent=5 // pred_region
        %s182 = ssub.s32 %s15, 1
        // Predicated region
        $region29: #{tpu_custom_call.1} parent=27 // pred_check
          %p183 = pneg %p62
        $region30: #{tpu_custom_call.1} parent=27 // pred_check_branch
          %185 = sbr.rel (%p183) target = $region32
        $region31: #{tpu_custom_call.1} parent=27 // pred_region
          %186 = dma.done [#allocation4], 256
        $region32: #{tpu_custom_call.1} parent=27 // pred_fallthru
          _
        %s187 = sand.u32 %s77, 1
        %s188 = scalar_lea.sflag [#allocation7], %s187
        %s189 = sand.u32 %s77, 1
        %s190 = smul.addr %s189, 128
        %s191 = scalar_lea.vmem [#allocation6], %s190
        // Predicated region
        $region33: #{tpu_custom_call.1} parent=27 // pred_check
          %p192 = pneg %p90
        $region34: #{tpu_custom_call.1} parent=27 // pred_check_branch
          %194 = sbr.rel (%p192) target = $region36
        $region35: #{tpu_custom_call.1} parent=27 // pred_region
          %195 = dma.done %s188, 2048
        $region36: #{tpu_custom_call.1} parent=27 // pred_fallthru
          _
        %p196 = pneg %p62
        %p197 = pneg %p59
        %s198 = sand.u32 %s77, 1
        %s199 = scalar_lea.sflag [#allocation7], %s198
        %s200 = sand.u32 %s77, 1
        %s201 = smul.addr %s200, 128
        %s202 = scalar_lea.vmem [#allocation6], %s201
        %p203 = pneg %p90
        %p204 = pneg %p87
        %p205 = pneg %p118
        %p206 = pneg %p115
        %s207 = sand.u32 %s105, 1
        %s208 = scalar_lea.sflag [#allocation5], %s207
        %s209 = sand.u32 %s105, 1
        %s210 = smul.addr %s209, 16
        %s211 = scalar_lea.vmem [#allocation8], %s210
        %s212 = smul.u32 2, %s25
        %s213 = smul.u32 16, %s26
        %s214 = smul.u32 2, %s25
        %p215 = scmp.eq.s32.totalorder %s27, 0
        // Predicated region
        $region37: #{tpu_custom_call.1} parent=27 // pred_check
          %p216 = pneg %p215
        $region38: #{tpu_custom_call.1} parent=27 // pred_check_branch
          %218 = sbr.rel (%p216) target = $region40
        $region39: #{tpu_custom_call.1} parent=27 // pred_region
          %219 = vst [vmem:[#allocation2] sm:$0xff] 0.0
          %220 = vst [vmem:[#allocation2 + $0x8] sm:$0xff] 0.0
        $region40: #{tpu_custom_call.1} parent=27 // pred_fallthru
          _
        %v221 = vld [vmem:[#allocation2] sm:$0xff]
        %v222 = vld [vmem:[#allocation2 + $0x8] sm:$0xff]
        %v223 = vld [vmem:[#allocation3] sm:$0xff]
        %v224 = vld [vmem:[#allocation3 + $0x8] sm:$0xff]
        %v225 = vld [vmem:[%s191] sm:$0xff]
        %v226 = vld [vmem:[%s191 + $0x8] sm:$0xff]
        %v227 = vld [vmem:[%s191 + $0x10] sm:$0xff]
        %v228 = vld [vmem:[%s191 + $0x18] sm:$0xff]
        %v229 = vld [vmem:[%s191 + $0x20] sm:$0xff]
        %v230 = vld [vmem:[%s191 + $0x28] sm:$0xff]
        %v231 = vld [vmem:[%s191 + $0x30] sm:$0xff]
        %v232 = vld [vmem:[%s191 + $0x38] sm:$0xff]
        %v233 = vld [vmem:[%s191 + $0x40] sm:$0xff]
        %v234 = vld [vmem:[%s191 + $0x48] sm:$0xff]
        %v235 = vld [vmem:[%s191 + $0x50] sm:$0xff]
        %v236 = vld [vmem:[%s191 + $0x58] sm:$0xff]
        %v237 = vld [vmem:[%s191 + $0x60] sm:$0xff]
        %v238 = vld [vmem:[%s191 + $0x68] sm:$0xff]
        %v239 = vld [vmem:[%s191 + $0x70] sm:$0xff]
        %v240 = vld [vmem:[%s191 + $0x78] sm:$0xff]
        %241 = vmatprep.subr.mxu0 0.0
        %242 = vmatpush1.xpose.msra.mxu0 %v225
        %243 = vmatprep.subr.mxu0 0.0
        %244 = vmatpush1.xpose.msra.mxu0 %v226
        %245 = vmatprep.subr.mxu0 0.0
        %246 = vmatpush1.xpose.msra.mxu0 %v227
        %247 = vmatprep.subr.mxu0 0.0
        %248 = vmatpush1.xpose.msra.mxu0 %v228
        %249 = vmatprep.subr.mxu0 0.0
        %250 = vmatpush1.xpose.msra.mxu0 %v229
        %251 = vmatprep.subr.mxu0 0.0
        %252 = vmatpush1.xpose.msra.mxu0 %v230
        %253 = vmatprep.subr.mxu0 0.0
        %254 = vmatpush1.xpose.msra.mxu0 %v231
        %255 = vmatprep.subr.mxu0 0.0
        %256 = vmatpush1.xpose.msra.mxu0 %v232
        %257 = vmatprep.subr.mxu0 0.0
        %258 = vmatpush1.xpose.msra.mxu0 %v233
        %259 = vmatprep.subr.mxu0 0.0
        %260 = vmatpush1.xpose.msra.mxu0 %v234
        %261 = vmatprep.subr.mxu0 0.0
        %262 = vmatpush1.xpose.msra.mxu0 %v235
        %263 = vmatprep.subr.mxu0 0.0
        %264 = vmatpush1.xpose.msra.mxu0 %v236
        %265 = vmatprep.subr.mxu0 0.0
        %266 = vmatpush1.xpose.msra.mxu0 %v237
        %267 = vmatprep.subr.mxu0 0.0
        %268 = vmatpush1.xpose.msra.mxu0 %v238
        %269 = vmatprep.subr.mxu0 0.0
        %270 = vmatpush1.xpose.msra.mxu0 %v239
        %271 = vmatprep.subr.mxu0 0.0
        %272 = vmatpush1.xpose.msra.mxu0 %v240
        %273 = vmatprep.subr.mxu0 0.0
        %274 = vmatpush1.xpose.msra.mxu0 0.0
        %275 = vmatprep.subr.mxu0 0.0
        %276 = vmatpush1.xpose.msra.mxu0 0.0
        %277 = vmatprep.subr.mxu0 0.0
        %278 = vmatpush1.xpose.msra.mxu0 0.0
        %279 = vmatprep.subr.mxu0 0.0
        %280 = vmatpush1.xpose.msra.mxu0 0.0
        %281 = vmatprep.subr.mxu0 0.0
        %282 = vmatpush1.xpose.msra.mxu0 0.0
        %283 = vmatprep.subr.mxu0 0.0
        %284 = vmatpush1.xpose.msra.mxu0 0.0
        %285 = vmatprep.subr.mxu0 0.0
        %286 = vmatpush1.xpose.msra.mxu0 0.0
        %287 = vmatprep.subr.mxu0 0.0
        %288 = vmatpush1.xpose.msra.mxu0 0.0
        %289 = vmatprep.subr.mxu0 0.0
        %290 = vmatpush1.xpose.msra.mxu0 0.0
        %291 = vmatprep.subr.mxu0 0.0
        %292 = vmatpush1.xpose.msra.mxu0 0.0
        %293 = vmatprep.subr.mxu0 0.0
        %294 = vmatpush1.xpose.msra.mxu0 0.0
        %295 = vmatprep.subr.mxu0 0.0
        %296 = vmatpush1.xpose.msra.mxu0 0.0
        %297 = vmatprep.subr.mxu0 0.0
        %298 = vmatpush1.xpose.msra.mxu0 0.0
        %299 = vmatprep.subr.mxu0 0.0
        %300 = vmatpush1.xpose.msra.mxu0 0.0
        %301 = vmatprep.subr.mxu0 0.0
        %302 = vmatpush1.xpose.msra.mxu0 0.0
        %303 = vmatprep.subr.mxu0 0.0
        %304 = vmatpush1.xpose.msra.mxu0 0.0
        %305 = vmatprep.mubr.f32.mxu0 0.0
        %306 = vmatmul.mubr.f32.gmra.mrb[0].mxu0 %v223
        %v307 = vpop.f32.mrb[0].mxu0
        %v308 = vadd.f32 0.0, %v307
        %v309 = vpop.f32.mrb[0].mxu0
        %310 = vmatprep.mubr.f32.mxu0 0.0
        %311 = vmatmul.mubr.f32.gmra.mrb[0].mxu0 %v224
        %v312 = vpop.f32.mrb[0].mxu0
        %v313 = vadd.f32 0.0, %v312
        %v314 = vpop.f32.mrb[0].mxu0
        %315 = vdwg.mxu0
        %v316 = vadd.f32 %v221, %v308
        %v317 = vadd.f32 %v222, %v313
        %318 = vst [vmem:[#allocation2] sm:$0xff] %v316
        %319 = vst [vmem:[#allocation2 + $0x8] sm:$0xff] %v317
        // Predicated region
        $region41: #{tpu_custom_call.1} parent=27 // pred_check
          %p320 = pneg %p215
        $region42: #{tpu_custom_call.1} parent=27 // pred_check_branch
          %322 = sbr.rel (%p320) target = $region44
        $region43: #{tpu_custom_call.1} parent=27 // pred_region
          %v323 = vld [vmem:[#allocation2] sm:$0xff]
          %v324 = vld [vmem:[#allocation2 + $0x8] sm:$0xff]
          %325 = vst [vmem:[%s211] sm:$0xff] %v323
          %326 = vst [vmem:[%s211 + $0x8] sm:$0xff] %v324
        $region44: #{tpu_custom_call.1} parent=27 // pred_fallthru
          _
        %s327 = sand.u32 %s105, 1
        %s328 = scalar_lea.sflag [#allocation5], %s327
        %s329 = sand.u32 %s105, 1
        %s330 = smul.addr %s329, 16
        %s331 = scalar_lea.vmem [#allocation8], %s330
        // Predicated region
        $region45: #{tpu_custom_call.1} parent=27 // pred_check
          %p332 = pneg %p115
        $region46: #{tpu_custom_call.1} parent=27 // pred_check_branch
          %334 = sbr.rel (%p332) target = $region48
        $region47: #{tpu_custom_call.1} parent=27 // pred_region
          %s335 = smul.u32 2, %s25
          %s337 = ssub.s32 256, 256
          %338 = vsyncadd %s328, %s337
          %s339 = smul.addr %s335, 3
          %s340 = sadd.s32 %s26, %s339
          %s341 = smul.addr %s340, 128
          %s342 = scalar_lea.hbm %s2, %s341
          %s343 = sshll.u32 %s331, 4
          %s344 = int_to_ptr.vmem [resolvable:$true] %s343
          %349 = dma.vmem_to_hbm [thread:$0]  %s344, 256, %s342, %s328, 128, 384, 8
        $region48: #{tpu_custom_call.1} parent=27 // pred_fallthru
          _
      $region28: #{tpu_custom_call.1} parent=5 // pred_fallthru
        _
      %p350 = scmp.le.s32.totalorder 2, %s15
      // Predicated region
      $region49: #{tpu_custom_call.1} parent=5 // pred_check
        %p351 = pneg %p350
      $region50: #{tpu_custom_call.1} parent=5 // pred_check_branch
        %353 = sbr.rel (%p351) target = $region52
      $region51: #{tpu_custom_call.1} parent=5 // pred_region
        %s354 = ssub.s32 %s15, 2
        // Predicated region
        $region53: #{tpu_custom_call.1} parent=51 // pred_check
          %p355 = pneg %p121
        $region54: #{tpu_custom_call.1} parent=51 // pred_check_branch
          %357 = sbr.rel (%p355) target = $region56
        $region55: #{tpu_custom_call.1} parent=51 // pred_region
          %s358 = sand.u32 %s106, 1
          %s359 = scalar_lea.sflag [#allocation5], %s358
          %s360 = sand.u32 %s106, 1
          %s361 = smul.addr %s360, 16
          %s362 = scalar_lea.vmem [#allocation8], %s361
          %363 = dma.done %s359, 256
        $region56: #{tpu_custom_call.1} parent=51 // pred_fallthru
          _
      $region52: #{tpu_custom_call.1} parent=5 // pred_fallthru
        _
    $region6: #{tpu_custom_call.1} parent=1 // loop_footer
      %s19 = sadd.s32 1, %s15
    $region7: #{tpu_custom_call.1} parent=1 // loop_footer_branch
      %14 = sbr.rel target = $region3
    $region8: #{tpu_custom_call.1} parent=1 // loop_exit
      _
    %364 = vsyncpa [#allocation4], 1
    %s365 = scalar_lea.sflag [#allocation4], 1
    %366 = vsyncpa %s365, 1
    %367 = vsyncpa [#allocation7], 1
    %s368 = scalar_lea.sflag [#allocation7], 1
    %369 = vsyncpa %s368, 1
    %370 = vsyncpa [#allocation5], 1
    %s371 = scalar_lea.sflag [#allocation5], 1
    %372 = vsyncpa %s371, 1

</llo_original>
